<compile_context>
chip_gen: v6e
topology: v6e:2x2x1
jax: 0.10.0
libtpu: 0.0.40
codegen_flags: <defaults>
</compile_context>

<pallas_src>
import functools
import math

import numpy as np

import jax
import jax.numpy as jnp
from jax.experimental import pallas as pl
from jax.experimental.pallas import tpu as pltpu

IGNORE = -1.0
GAMMA = 2.0                 # fixed to 2 in the module; final pow is done with jnp.square
BALANCE = 0.25
POS_WEIGHT = [1, 1, 1, 1, 1, 1, 1, 5, 5, 5, 1, 4]   # deterministic, from module __init__


def _focal_au_kernel(yp_ref, yt_ref, m_ref, pw_ref, out_ref, acc_ref, den_ref, *,
                     tiles_per_core, groups_per_tile, num_groups):
    p = pl.program_id(0)          # core-split chunk ("parallel")
    t = pl.program_id(1)          # block within this chunk ("arbitrary" reduction axis)

    @pl.when(t == 0)
    def _init():
        acc_ref[...] = jnp.zeros_like(acc_ref)
        den_ref[...] = jnp.zeros_like(den_ref)

    x = yp_ref[...].astype(jnp.float32)      # (GT, W) packed: W = 32 rows x 12 channels
    y = yt_ref[...].astype(jnp.float32)
    pwm1 = pw_ref[...]                       # (1, W) = pos_weight - 1, tiled per packed row

    # Numerically stable BCE-with-logits with pos_weight:
    #   l = (1 - y) * x + (1 + (pw - 1) * y) * softplus(-x)
    sp = jnp.maximum(-x, 0.0) + jnp.log1p(jnp.exp(-jnp.abs(x)))
    bce = (1.0 - y) * x + (1.0 + pwm1 * y) * sp

    # Row validity: an element is kept iff channel 0 of its ORIGINAL row != IGNORE.
    # m_ref is a (W, W) one-hot matrix that broadcasts each row's channel-0 flag to
    # all 12 lanes of its group on the otherwise-idle MXU (values stay exactly 0/1).
    logical_tile = p * tiles_per_core + t
    row_iota = jax.lax.broadcasted_iota(jnp.int32, (groups_per_tile, 1), 0)
    in_bounds = (logical_tile * groups_per_tile + row_iota) < num_groups
    validf = jnp.where(in_bounds, (y != IGNORE).astype(jnp.float32), 0.0)
    mask = jnp.dot(validf.astype(jnp.bfloat16), m_ref[...],
                   preferred_element_type=jnp.float32)

    # Deferred reduction: only element-wise accumulation on the per-step critical path.
    # jnp.where (not multiply) so NaN/Inf garbage in out-of-bounds rows never leaks in.
    acc_ref[...] += jnp.where(mask > 0.5, bce, 0.0)
    den_ref[...] += mask                      # sum(mask) == (#valid rows) * num_channels

    @pl.when(t == pl.num_programs(1) - 1)
    def _finalize():
        s = jnp.sum(acc_ref[...])
        d = jnp.sum(den_ref[...])
        lane = jax.lax.broadcasted_iota(jnp.int32, (1, 1, 2), 2)
        out_ref[...] = jnp.where(lane == 0, s, d)   # per-chunk partial [sum, count*C]


def focal_au_loss(y_pred, y_true, pos_weight=POS_WEIGHT, *,
                  groups_per_tile=1024, num_core_splits=2):
    n, c = y_pred.shape
    assert y_true.shape == (n, c)
    pw = np.asarray(pos_weight, dtype=np.float32)
    assert pw.shape == (c,)

    group = 128 // math.gcd(c, 128)          # original rows packed per lane-dense row (32)
    width = group * c                        # multiple of 128 (384 for C = 12)

    # Lane-dense repack: (N, C) -> (G, group*C). Zero-copy when N % group == 0; a ragged
    # tail only needs `group - rem` IGNORE rows (those rows are masked out in-kernel).
    rem = n % group
    if rem:
        pad = group - rem
        y_pred = jnp.pad(y_pred, ((0, pad), (0, 0)))
        y_true = jnp.pad(y_true, ((0, pad), (0, 0)), constant_values=IGNORE)
    g = y_pred.shape[0] // group
    yp = y_pred.reshape(g, width)
    yt = y_true.reshape(g, width)

    gt = g if g <= groups_per_tile else groups_per_tile
    assert gt == g or gt % 8 == 0, "groups_per_tile must be a multiple of 8"
    num_blocks = pl.cdiv(g, gt)
    splits = min(num_core_splits, num_blocks)          # v7x: 2 TCs; harmless elsewhere
    tiles_per_core = pl.cdiv(num_blocks, splits)
    last_block = num_blocks - 1

    # (W, W) one-hot "broadcast channel-0 flag over its 12-lane group" matrix (bf16,
    # exact for 0/1) and the tiled (pos_weight - 1) row; both loaded once, kept resident.
    k = np.arange(width)
    m_np = np.zeros((width, width), dtype=np.float32)
    m_np[(k // c) * c, k] = 1.0
    m_mat = jnp.asarray(m_np, dtype=jnp.bfloat16)
    pw_row = jnp.asarray(np.tile(pw - 1.0, group).reshape(1, width))

    def data_map(p, t):
        # Clamp so the DMA window always stays inside the array; the in-kernel row-index
        # mask drops any duplicated / overhanging rows, so correctness is unaffected.
        return (jnp.minimum(p * tiles_per_core + t, last_block), 0)

    kernel = functools.partial(
        _focal_au_kernel,
        tiles_per_core=tiles_per_core,
        groups_per_tile=gt,
        num_groups=g,
    )

    parts = pl.pallas_call(
        kernel,
        out_shape=jax.ShapeDtypeStruct((splits, 1, 2), jnp.float32),
        grid_spec=pltpu.PrefetchScalarGridSpec(
            num_scalar_prefetch=0,
            grid=(splits, tiles_per_core),
            in_specs=[
                pl.BlockSpec((gt, width), data_map),                 # packed logits
                pl.BlockSpec((gt, width), data_map),                 # packed labels
                pl.BlockSpec((width, width), lambda p, t: (0, 0)),   # mask-broadcast matrix
                pl.BlockSpec((1, width), lambda p, t: (0, 0)),       # pos_weight - 1 row
            ],
            out_specs=pl.BlockSpec((1, 1, 2), lambda p, t: (p, 0, 0)),
            scratch_shapes=[
                pltpu.VMEM((gt, width), jnp.float32),   # masked BCE accumulator
                pltpu.VMEM((gt, width), jnp.float32),   # mask accumulator (denominator)
            ],
        ),
        compiler_params=pltpu.CompilerParams(
            dimension_semantics=("parallel", "arbitrary"),
            vmem_limit_bytes=40 * 1024 * 1024,
        ),
    )(yp, yt, m_mat, pw_row)

    # Tiny scalar epilogue on the per-core partials (as recommended for the v7x split).
    s = jnp.sum(parts[:, 0, 0])
    d = jnp.sum(parts[:, 0, 1])
    mean_bce = s / d   # NaN when there are no valid rows — matches torch .mean() of empty
    pt = jnp.exp(-mean_bce)
    focal = jnp.square(1.0 - pt) * mean_bce        # gamma == 2 -> square, no pow/log path
    return mean_bce + BALANCE * focal


def _reference_loss(y_pred, y_true, pw):
    # pure-JAX (eager) reference of the PyTorch module semantics
    valid = y_true[:, 0] != IGNORE
    x = y_pred[valid].astype(jnp.float32)
    y = y_true[valid].astype(jnp.float32)
    sp = jnp.maximum(-x, 0.0) + jnp.log1p(jnp.exp(-jnp.abs(x)))
    bce = (1.0 - y) * x + (1.0 + (pw[None, :] - 1.0) * y) * sp
    m = bce.mean()
    pt = jnp.exp(-m)
    return m + BALANCE * jnp.square(1.0 - pt) * m


if __name__ == "__main__":
    key = jax.random.PRNGKey(0)
    pw = jnp.asarray(POS_WEIGHT, dtype=jnp.float32)

    def make_inputs(k, n, ignore_rows):
        k1, k2 = jax.random.split(k)
        y_pred = jax.random.normal(k1, (n, 12), dtype=jnp.float32)
        y_true = jax.random.bernoulli(k2, 0.4, (n, 12)).astype(jnp.float32)
        for r in ignore_rows:
            y_true = y_true.at[r, 0].set(IGNORE)
        return y_pred, y_true

    def check(out, ref):
        out = jax.block_until_ready(out)
        assert jnp.allclose(out, ref, rtol=1e-5, atol=1e-5), (out, ref)

    k0, k1, k2, k3 = jax.random.split(key, 4)

    # 1) aligned batch (zero-copy lane-dense repack), single block
    yp, yt = make_inputs(k0, 64, (1, 5, 33))
    check(focal_au_loss(yp, yt), _reference_loss(yp, yt, pw))

    # 2) ragged batch (small IGNORE tail pad to reach a multiple of 32)
    yp, yt = make_inputs(k1, 40, (0, 7, 39))
    check(focal_au_loss(yp, yt), _reference_loss(yp, yt, pw))

    # 3) multi-block grid: both core-split chunks active + masked partial last block
    yp, yt = make_inputs(k2, 320, (3, 100, 250, 319))
    check(focal_au_loss(yp, yt, groups_per_tile=8), _reference_loss(yp, yt, pw))

    # 4) bf16 logits read as-is (half the HBM traffic), upcast inside the kernel
    check(focal_au_loss(yp.astype(jnp.bfloat16), yt, groups_per_tile=8),
          _reference_loss(yp.astype(jnp.bfloat16).astype(jnp.float32), yt, pw))

    # 5) larger ragged batch exercising the default big-tile path (grid 2x2)
    yp, yt = make_inputs(k3, 100_008, (0, 12345, 67890, 100_007))
    check(focal_au_loss(yp, yt), _reference_loss(yp, yt, pw))

    print("KERNEL_OK")
</pallas_src>

<mosaic_0001>
module attributes {stable_mosaic.version = 11 : i64} {
  func.func @_focal_au_kernel(%arg0: i32, %arg1: i32, %arg2: memref<2x384xf32, #tpu.memory_space<vmem>>, %arg3: memref<2x384xf32, #tpu.memory_space<vmem>>, %arg4: memref<384x384xbf16, #tpu.memory_space<vmem>>, %arg5: memref<1x384xf32, #tpu.memory_space<vmem>>, %arg6: memref<1x1x2xf32, #tpu.memory_space<vmem>>, %arg7: memref<2x384xf32, #tpu.memory_space<vmem>>, %arg8: memref<2x384xf32, #tpu.memory_space<vmem>>) attributes {dimension_semantics = [#tpu.dimension_semantics<parallel>, #tpu.dimension_semantics<arbitrary>], iteration_bounds = array<i64: 1, 1>, scalar_prefetch = 0 : i64, scratch_operands = 2 : i64, tpu.core_type = #tpu.core_type<tc>, window_params = [{transform_indices = @transform_0, window_bounds = array<i64: 2, 384>}, {transform_indices = @transform_1, window_bounds = array<i64: 2, 384>}, {pipeline_mode = #tpu.pipeline_mode<synchronous>, transform_indices = @transform_2, window_bounds = array<i64: 384, 384>}, {pipeline_mode = #tpu.pipeline_mode<synchronous>, transform_indices = @transform_3, window_bounds = array<i64: 1, 384>}, {transform_indices = @transform_4, window_bounds = array<i64: 1, 1, 2>}]} {
    %c0_i32 = arith.constant 0 : i32
    %0 = arith.cmpi eq, %arg1, %c0_i32 : i32
    %1 = arith.extui %0 : i1 to i32
    %c0_i32_0 = arith.constant 0 : i32
    %2 = arith.cmpi ne, %1, %c0_i32_0 : i32
    scf.if %2 {
      %cst_28 = arith.constant 0.000000e+00 : f32
      %57 = vector.broadcast %cst_28 : f32 to vector<2x384xf32>
      %c0_29 = arith.constant 0 : index
      %c0_30 = arith.constant 0 : index
      %58 = vector.load %arg7[%c0_29, %c0_30] : memref<2x384xf32, #tpu.memory_space<vmem>>, vector<2x384xf32>
      tpu.vector_store %arg7[%c0_29, %c0_30], %57 {strides = array<i32>} : memref<2x384xf32, #tpu.memory_space<vmem>>, vector<2x384xf32>,
      %cst_31 = arith.constant 0.000000e+00 : f32
      %59 = vector.broadcast %cst_31 : f32 to vector<2x384xf32>
      %c0_32 = arith.constant 0 : index
      %c0_33 = arith.constant 0 : index
      %60 = vector.load %arg8[%c0_32, %c0_33] : memref<2x384xf32, #tpu.memory_space<vmem>>, vector<2x384xf32>
      tpu.vector_store %arg8[%c0_32, %c0_33], %59 {strides = array<i32>} : memref<2x384xf32, #tpu.memory_space<vmem>>, vector<2x384xf32>,
    } else {
    }
    %c0 = arith.constant 0 : index
    %c0_1 = arith.constant 0 : index
    %3 = vector.load %arg2[%c0, %c0_1] : memref<2x384xf32, #tpu.memory_space<vmem>>, vector<2x384xf32>
    %c0_2 = arith.constant 0 : index
    %c0_3 = arith.constant 0 : index
    %4 = vector.load %arg3[%c0_2, %c0_3] : memref<2x384xf32, #tpu.memory_space<vmem>>, vector<2x384xf32>
    %c0_4 = arith.constant 0 : index
    %c0_5 = arith.constant 0 : index
    %5 = vector.load %arg5[%c0_4, %c0_5] : memref<1x384xf32, #tpu.memory_space<vmem>>, vector<1x384xf32>
    %cst = arith.constant 0.000000e+00 : f32
    %6 = vector.broadcast %cst : f32 to vector<2x384xf32>
    %7 = arith.subf %6, %3 : vector<2x384xf32>
    %cst_6 = arith.constant 0.000000e+00 : f32
    %8 = vector.broadcast %cst_6 : f32 to vector<2x384xf32>
    %9 = arith.maximumf %7, %8 : vector<2x384xf32>
    %10 = math.absf %3 : vector<2x384xf32>
    %cst_7 = arith.constant 0.000000e+00 : f32
    %11 = vector.broadcast %cst_7 : f32 to vector<2x384xf32>
    %12 = arith.subf %11, %10 : vector<2x384xf32>
    %13 = math.exp %12 : vector<2x384xf32>
    %14 = math.log1p %13 : vector<2x384xf32>
    %15 = arith.addf %9, %14 : vector<2x384xf32>
    %cst_8 = arith.constant 1.000000e+00 : f32
    %16 = vector.broadcast %cst_8 : f32 to vector<2x384xf32>
    %17 = arith.subf %16, %4 : vector<2x384xf32>
    %18 = arith.mulf %17, %3 : vector<2x384xf32>
    %19 = vector.broadcast %5 : vector<1x384xf32> to vector<2x384xf32>
    %20 = arith.mulf %19, %4 : vector<2x384xf32>
    %cst_9 = arith.constant 1.000000e+00 : f32
    %21 = vector.broadcast %cst_9 : f32 to vector<2x384xf32>
    %22 = arith.addf %21, %20 : vector<2x384xf32>
    %23 = arith.mulf %22, %15 : vector<2x384xf32>
    %24 = arith.addf %18, %23 : vector<2x384xf32>
    %c1_i32 = arith.constant 1 : i32
    %25 = arith.muli %arg0, %c1_i32 : i32
    %26 = arith.addi %25, %arg1 : i32
    %27 = tpu.iota {dimensions = array<i32: 0>} : vector<2x1xi32>
    %c2_i32 = arith.constant 2 : i32
    %28 = arith.muli %26, %c2_i32 : i32
    %29 = vector.broadcast %28 : i32 to vector<2x1xi32>
    %30 = arith.addi %29, %27 : vector<2x1xi32>
    %c2_i32_10 = arith.constant 2 : i32
    %31 = vector.broadcast %c2_i32_10 : i32 to vector<2x1xi32>
    %32 = arith.cmpi slt, %30, %31 : vector<2x1xi32>
    %cst_11 = arith.constant -1.000000e+00 : f32
    %33 = vector.broadcast %cst_11 : f32 to vector<2x384xf32>
    %34 = arith.cmpf one, %4, %33 : vector<2x384xf32>
    %35 = arith.extui %34 : vector<2x384xi1> to vector<2x384xi32>
    %36 = arith.sitofp %35 : vector<2x384xi32> to vector<2x384xf32>
    %cst_12 = arith.constant 0.000000e+00 : f32
    %37 = vector.shape_cast %32 : vector<2x1xi1> to vector<2x1xi1>
    %38 = vector.broadcast %37 : vector<2x1xi1> to vector<2x384xi1>
    %39 = vector.broadcast %cst_12 : f32 to vector<2x384xf32>
    %40 = arith.select %38, %36, %39 : vector<2x384xi1>, vector<2x384xf32>
    %41 = arith.truncf %40 : vector<2x384xf32> to vector<2x384xbf16>
    %c0_13 = arith.constant 0 : index
    %c0_14 = arith.constant 0 : index
    %42 = vector.load %arg4[%c0_13, %c0_14] : memref<384x384xbf16, #tpu.memory_space<vmem>>, vector<384x384xbf16>
    %cst_15 = arith.constant dense<0.000000e+00> : vector<2x384xf32>
    %43 = tpu.matmul %41, %42, %cst_15 {dimension_numbers = #tpu.dot_dimension_numbers<[1], [0], [0], [1], [0, 0, 1, 1], [], []>} : vector<2x384xbf16>, vector<384x384xbf16>, vector<2x384xf32> -> vector<2x384xf32>
    %c0_16 = arith.constant 0 : index
    %c0_17 = arith.constant 0 : index
    %44 = vector.load %arg7[%c0_16, %c0_17] : memref<2x384xf32, #tpu.memory_space<vmem>>, vector<2x384xf32>
    %cst_18 = arith.constant 5.000000e-01 : f32
    %45 = vector.broadcast %cst_18 : f32 to vector<2x384xf32>
    %46 = arith.cmpf ogt, %43, %45 : vector<2x384xf32>
    %cst_19 = arith.constant 0.000000e+00 : f32
    %47 = vector.broadcast %cst_19 : f32 to vector<2x384xf32>
    %48 = arith.select %46, %24, %47 : vector<2x384xi1>, vector<2x384xf32>
    %49 = arith.addf %44, %48 : vector<2x384xf32>
    %c0_20 = arith.constant 0 : index
    %c0_21 = arith.constant 0 : index
    %50 = vector.load %arg7[%c0_20, %c0_21] : memref<2x384xf32, #tpu.memory_space<vmem>>, vector<2x384xf32>
    tpu.vector_store %arg7[%c0_20, %c0_21], %49 {strides = array<i32>} : memref<2x384xf32, #tpu.memory_space<vmem>>, vector<2x384xf32>,
    %c0_22 = arith.constant 0 : index
    %c0_23 = arith.constant 0 : index
    %51 = vector.load %arg8[%c0_22, %c0_23] : memref<2x384xf32, #tpu.memory_space<vmem>>, vector<2x384xf32>
    %52 = arith.addf %51, %43 : vector<2x384xf32>
    %c0_24 = arith.constant 0 : index
    %c0_25 = arith.constant 0 : index
    %53 = vector.load %arg8[%c0_24, %c0_25] : memref<2x384xf32, #tpu.memory_space<vmem>>, vector<2x384xf32>
    tpu.vector_store %arg8[%c0_24, %c0_25], %52 {strides = array<i32>} : memref<2x384xf32, #tpu.memory_space<vmem>>, vector<2x384xf32>,
    %c0_i32_26 = arith.constant 0 : i32
    %54 = arith.cmpi eq, %arg1, %c0_i32_26 : i32
    %55 = arith.extui %54 : i1 to i32
    %c0_i32_27 = arith.constant 0 : i32
    %56 = arith.cmpi ne, %55, %c0_i32_27 : i32
    scf.if %56 {
      %c0_28 = arith.constant 0 : index
      %c0_29 = arith.constant 0 : index
      %57 = vector.load %arg7[%c0_28, %c0_29] : memref<2x384xf32, #tpu.memory_space<vmem>>, vector<2x384xf32>
      %58 = vector.shape_cast %57 : vector<2x384xf32> to vector<1x2x384xf32>
      %cst_30 = arith.constant dense<0.000000e+00> : vector<1xf32>
      %59 = vector.multi_reduction <add>, %58, %cst_30 [1, 2] : vector<1x2x384xf32> to vector<1xf32>
      %60 = vector.shape_cast %59 : vector<1xf32> to vector<1x1x1xf32>
      %61 = vector.extract %60[0, 0, 0] : f32 from vector<1x1x1xf32>
      %c0_31 = arith.constant 0 : index
      %c0_32 = arith.constant 0 : index
      %62 = vector.load %arg8[%c0_31, %c0_32] : memref<2x384xf32, #tpu.memory_space<vmem>>, vector<2x384xf32>
      %63 = vector.shape_cast %62 : vector<2x384xf32> to vector<1x2x384xf32>
      %cst_33 = arith.constant dense<0.000000e+00> : vector<1xf32>
      %64 = vector.multi_reduction <add>, %63, %cst_33 [1, 2] : vector<1x2x384xf32> to vector<1xf32>
      %65 = vector.shape_cast %64 : vector<1xf32> to vector<1x1x1xf32>
      %66 = vector.extract %65[0, 0, 0] : f32 from vector<1x1x1xf32>
      %67 = tpu.iota {dimensions = array<i32: 2>} : vector<1x1x2xi32>
      %c0_i32_34 = arith.constant 0 : i32
      %68 = vector.broadcast %c0_i32_34 : i32 to vector<1x1x2xi32>
      %69 = arith.cmpi eq, %67, %68 : vector<1x1x2xi32>
      %70 = vector.broadcast %61 : f32 to vector<1x1x2xf32>
      %71 = vector.broadcast %66 : f32 to vector<1x1x2xf32>
      %72 = arith.select %69, %70, %71 : vector<1x1x2xi1>, vector<1x1x2xf32>
      %c0_35 = arith.constant 0 : index
      %c0_36 = arith.constant 0 : index
      %c0_37 = arith.constant 0 : index
      %73 = vector.load %arg6[%c0_35, %c0_36, %c0_37] : memref<1x1x2xf32, #tpu.memory_space<vmem>>, vector<1x1x2xf32>
      tpu.vector_store %arg6[%c0_35, %c0_36, %c0_37], %72 {strides = array<i32>} : memref<1x1x2xf32, #tpu.memory_space<vmem>>, vector<1x1x2xf32>,
    } else {
    }
    return
  }
  func.func @transform_0(%arg0: i32, %arg1: i32) -> (i32, i32) {
    %c1_i32 = arith.constant 1 : i32
    %0 = arith.muli %arg0, %c1_i32 : i32
    %1 = arith.addi %0, %arg1 : i32
    %c0_i32 = arith.constant 0 : i32
    %2 = arith.minsi %1, %c0_i32 : i32
    %c0_i32_0 = arith.constant 0 : i32
    %c0_i32_1 = arith.constant 0 : i32
    return %2, %c0_i32_0 : i32, i32
  }
  func.func @transform_1(%arg0: i32, %arg1: i32) -> (i32, i32) {
    %c1_i32 = arith.constant 1 : i32
    %0 = arith.muli %arg0, %c1_i32 : i32
    %1 = arith.addi %0, %arg1 : i32
    %c0_i32 = arith.constant 0 : i32
    %2 = arith.minsi %1, %c0_i32 : i32
    %c0_i32_0 = arith.constant 0 : i32
    %c0_i32_1 = arith.constant 0 : i32
    return %2, %c0_i32_0 : i32, i32
  }
  func.func @transform_2(%arg0: i32, %arg1: i32) -> (i32, i32) {
    %c0_i32 = arith.constant 0 : i32
    %c0_i32_0 = arith.constant 0 : i32
    %c0_i32_1 = arith.constant 0 : i32
    return %c0_i32, %c0_i32_0 : i32, i32
  }
  func.func @transform_3(%arg0: i32, %arg1: i32) -> (i32, i32) {
    %c0_i32 = arith.constant 0 : i32
    %c0_i32_0 = arith.constant 0 : i32
    %c0_i32_1 = arith.constant 0 : i32
    return %c0_i32, %c0_i32_0 : i32, i32
  }
  func.func @transform_4(%arg0: i32, %arg1: i32) -> (i32, i32, i32) {
    %c0_i32 = arith.constant 0 : i32
    %c0_i32_0 = arith.constant 0 : i32
    %c0_i32_1 = arith.constant 0 : i32
    return %arg0, %c0_i32, %c0_i32_0 : i32, i32, i32
  }
}

</mosaic_0001>

<llo_original>
// kernel: tpu_custom_call.1
$region0: #{tpu_custom_call.1}
  #allocation0 [shape = 'u32[]', space=smem, size = 0x4, offset = 0x4, fixed_abs, tag = 'smem constant byte address 0x4 - core index']
  #allocation1 [shape = 'u32[144,128]{1,0:T(1,128)}', space=vmem, size = 0x12000, scoped, tag = 'internal scratch']
  #allocation2 [shape = 'f32[2,384]{1,0:T(2,128)}', space=vmem, size = 0xc00, scoped, tag = 'scratch operand']
  #allocation3 [shape = 'f32[2,384]{1,0:T(2,128)}', space=vmem, size = 0xc00, scoped, tag = 'scratch operand']
  %s0 = inlined_call_operand.hbm [shape: f32[2,384], index: 0, kind: input, shape index: {}]
  %s1 = inlined_call_operand.hbm [shape: f32[2,384], index: 1, kind: input, shape index: {}]
  %s2 = inlined_call_operand.hbm [shape: bf16[384,384], index: 2, kind: input, shape index: {}]
  %s3 = inlined_call_operand.vmem [shape: f32[1,384], index: 3, kind: input, shape index: {}]
  %s4 = inlined_call_operand.hbm [shape: f32[1,1,2], index: 4, kind: output, shape index: {}]
  %s5 = sld [smem:[#allocation0]]
  $region46: #{tpu_custom_call.1} parent=0
    _
  %s7 = ssub.s32 1, %s5
  %s8 = scalar_select 0, %s7, %s5
  $region1: #{tpu_custom_call.1} parent=0
    #allocation4 [shape = 'u8[3072]{0}', space=vmem, size = 0xc00, scoped, tag = 'input window, operand 0, single buffered']
    #allocation5 [shape = 's32[1]{0}', space=sflag, size = 0x4, scoped, tag = 'scoped memory for tpu_custom_call.1']
    #allocation6 [shape = 's32[1]{0}', space=sflag, size = 0x4, scoped, tag = 'scoped memory for tpu_custom_call.1']
    #allocation7 [shape = 'u8[3072]{0}', space=vmem, size = 0xc00, scoped, tag = 'input window, operand 1, single buffered']
    #allocation8 [shape = 's32[1]{0}', space=sflag, size = 0x4, scoped, tag = 'scoped memory for tpu_custom_call.1']
    #allocation9 [shape = 'u8[294912]{0}', space=vmem, size = 0x48000, scoped, tag = 'input window, operand 2, single buffered']
    #allocation10 [shape = 'u8[512]{0}', space=vmem, size = 0x400, scoped, tag = 'output window, operand 0, single buffered']
    %9 = vsyncpa [#allocation5], 0
    %10 = vsyncpa [#allocation8], 0
    %11 = vsyncpa [#allocation6], 0
    // Predicated region
    $region2: #{tpu_custom_call.1} parent=1 // pred_check
      _
    $region3: #{tpu_custom_call.1} parent=1 // pred_check_branch
      %13 = sbr.rel (0) target = $region5
    $region4: #{tpu_custom_call.1} parent=1 // pred_region
      %s14 = sadd.s32 0, 0
      %p15 = scmp.lt.s32.totalorder %s14, 0
      %s16 = scalar_select %p15, %s14, 0
      %s18 = ssub.s32 96, 96
      %19 = vsyncadd [#allocation5], %s18
      %s20 = smul.addr %s16, 3
      %s21 = smul.addr %s20, 32
      %s22 = scalar_lea.hbm %s0, %s21
      %s24 = sshll.u32 [#allocation4], 4
      %s25 = int_to_ptr.vmem [resolvable:$true] %s24
      %27 = dma.hbm_to_vmem [thread:$0]  %s22, 96, %s25, [#allocation5]
    $region5: #{tpu_custom_call.1} parent=1 // pred_fallthru
      _
    // Predicated region
    $region6: #{tpu_custom_call.1} parent=1 // pred_check
      _
    $region7: #{tpu_custom_call.1} parent=1 // pred_check_branch
      %29 = sbr.rel (0) target = $region9
    $region8: #{tpu_custom_call.1} parent=1 // pred_region
      %s30 = sadd.s32 0, 0
      %p31 = scmp.lt.s32.totalorder %s30, 0
      %s32 = scalar_select %p31, %s30, 0
      %s34 = ssub.s32 96, 96
      %35 = vsyncadd [#allocation8], %s34
      %s36 = smul.addr %s32, 3
      %s37 = smul.addr %s36, 32
      %s38 = scalar_lea.hbm %s1, %s37
      %s40 = sshll.u32 [#allocation7], 4
      %s41 = int_to_ptr.vmem [resolvable:$true] %s40
      %43 = dma.hbm_to_vmem [thread:$0]  %s38, 96, %s41, [#allocation8]
    $region9: #{tpu_custom_call.1} parent=1 // pred_fallthru
      _
    // Predicated region
    $region10: #{tpu_custom_call.1} parent=1 // pred_check
      _
    $region11: #{tpu_custom_call.1} parent=1 // pred_check_branch
      %45 = sbr.rel (0) target = $region13
    $region12: #{tpu_custom_call.1} parent=1 // pred_region
      %s47 = ssub.s32 9216, 9216
      %48 = vsyncadd [#allocation8], %s47
      %s49 = sshll.u32 [#allocation9], 4
      %s50 = int_to_ptr.vmem [resolvable:$true] %s49
      %55 = dma.hbm_to_vmem [thread:$0]  %s2, 9216, %s50, [#allocation8], 192, 192, 12
    $region13: #{tpu_custom_call.1} parent=1 // pred_fallthru
      _
    // Predicated region
    $region14: #{tpu_custom_call.1} parent=1 // pred_check
      _
    $region15: #{tpu_custom_call.1} parent=1 // pred_check_branch
      %57 = sbr.rel (0) target = $region17
    $region16: #{tpu_custom_call.1} parent=1 // pred_region
      _
    $region17: #{tpu_custom_call.1} parent=1 // pred_fallthru
      _
    // Predicated region
    $region18: #{tpu_custom_call.1} parent=1 // pred_check
      _
    $region19: #{tpu_custom_call.1} parent=1 // pred_check_branch
      %59 = sbr.rel (0) target = $region21
    $region20: #{tpu_custom_call.1} parent=1 // pred_region
      %60 = dma.done [#allocation5], 96
    $region21: #{tpu_custom_call.1} parent=1 // pred_fallthru
      _
    // Predicated region
    $region22: #{tpu_custom_call.1} parent=1 // pred_check
      _
    $region23: #{tpu_custom_call.1} parent=1 // pred_check_branch
      %62 = sbr.rel (0) target = $region25
    $region24: #{tpu_custom_call.1} parent=1 // pred_region
      %63 = dma.done [#allocation8], 96
    $region25: #{tpu_custom_call.1} parent=1 // pred_fallthru
      _
    // Predicated region
    $region26: #{tpu_custom_call.1} parent=1 // pred_check
      _
    $region27: #{tpu_custom_call.1} parent=1 // pred_check_branch
      %65 = sbr.rel (0) target = $region29
    $region28: #{tpu_custom_call.1} parent=1 // pred_region
      %66 = dma.done [#allocation8], 9216
    $region29: #{tpu_custom_call.1} parent=1 // pred_fallthru
      _
    %s67 = sadd.s32 0, 0
    %p68 = scmp.lt.s32.totalorder %s67, 0
    %s69 = scalar_select %p68, %s67, 0
    %s70 = sadd.s32 0, 0
    %p71 = scmp.lt.s32.totalorder %s70, 0
    %s72 = scalar_select %p71, %s70, 0
    %p74 = scmp.eq.s32.totalorder 0, 0
    // Predicated region
    $region30: #{tpu_custom_call.1} parent=1 // pred_check
      %p75 = pneg %p74
    $region31: #{tpu_custom_call.1} parent=1 // pred_check_branch
      %77 = sbr.rel (%p75) target = $region33
    $region32: #{tpu_custom_call.1} parent=1 // pred_region
      %78 = vst [vmem:[#allocation2] sm:$0x3f] 0.0
      %79 = vst [vmem:[#allocation3] sm:$0x3f] 0.0
    $region33: #{tpu_custom_call.1} parent=1 // pred_fallthru
      _
    %v80 = vld [vmem:[#allocation4] sm:$0x3f]
    %v81 = vld [vmem:[#allocation7] sm:$0x3f]
    %v82 = vld [vmem:[%s3] sm:$0x7]
    %v83 = vsub.f32 0.0, %v80
    %v84 = vmax.f32 %v83, 0.0
    %v85 = vand.u32 2147483647, %v80
    %v86 = vsub.f32 0.0, %v85
    %v87 = vmul.f32 %v86, 1.442695
    %v88 = vpow.pop %v87
    %v89 = vadd.f32 %v88, 1.0
    %v90 = vlog2.pop %v89
    %v91 = vmul.f32 %v90, 0.6931472
    %v92 = vmul.f32 -0.5, %v88
    %v93 = vadd.f32 %v92, 1.0
    %v94 = vmul.f32 %v93, %v88
    %v95 = vand.u32 2147483647, %v88
    %vm96 = vcmp.lt.f32.partialorder %v95, 0.0004427343
    %v97 = vsel %vm96, %v94, %v91
    %v98 = vadd.f32 %v84, %v97
    %v99 = vsub.f32 1.0, %v81
    %v100 = vmul.f32 %v99, %v80
    %v102 = vlaneseq
    %v103 = vshrl.u32 %v102, 7
    %v104 = vsub.s32 0, %v103
    %v105 = vrot.slane %v82, %v104
    %v106 = vlaneseq
    %v107 = vshrl.u32 %v106, 7
    %v108 = vsub.s32 1, %v107
    %v109 = vrot.slane %v82, %v108
    %v110 = vlaneseq
    %v111 = vshrl.u32 %v110, 7
    %v112 = vsub.s32 2, %v111
    %v113 = vrot.slane %v82, %v112
    %v118 = vcombine.high %v81, %v81
    %v120 = vunpack.c.l.s4 1983009808
    %v121 = vunpack.c.0.s8 %v120
    %v122 = vlaneseq
    %v123 = vshrl.u32 %v122, 7
    %v124 = vsub.s32 %v121, %v123
    %v125 = vrot.slane %v81, %v124
    %v127 = vunpack.c.l.s4 1983009808
    %v128 = vunpack.c.0.s8 %v127
    %v129 = vlaneseq
    %v130 = vshrl.u32 %v129, 7
    %v131 = vsub.s32 %v128, %v130
    %v132 = vrot.slane %v118, %v131
    %v133 = vcombine.high %v125, %v125
    %v137 = vmul.f32 %v105, %v125
    %v138 = vmul.f32 %v109, %v133
    %v139 = vmul.f32 %v113, %v132
    %v140 = vadd.f32 %v137, 1.0
    %v141 = vadd.f32 %v138, 1.0
    %v142 = vadd.f32 %v139, 1.0
    %v144 = vcombine.high %v98, %v98
    %v146 = vunpack.c.l.s4 1983009808
    %v147 = vunpack.c.0.s8 %v146
    %v148 = vlaneseq
    %v149 = vshrl.u32 %v148, 7
    %v150 = vsub.s32 %v147, %v149
    %v151 = vrot.slane %v98, %v150
    %v153 = vunpack.c.l.s4 1983009808
    %v154 = vunpack.c.0.s8 %v153
    %v155 = vlaneseq
    %v156 = vshrl.u32 %v155, 7
    %v157 = vsub.s32 %v154, %v156
    %v158 = vrot.slane %v144, %v157
    %v159 = vcombine.high %v151, %v151
    %v163 = vmul.f32 %v140, %v151
    %v164 = vmul.f32 %v141, %v159
    %v165 = vmul.f32 %v142, %v158
    %v169 = vcombine.low %v163, %v164
    %v171 = vunpack.c.l.s4 1983009808
    %v172 = vunpack.c.0.s8 %v171
    %v173 = vlaneseq
    %v174 = vshrl.u32 %v173, 7
    %v175 = vsub.s32 %v172, %v174
    %v176 = vrot.slane %v169, %v175
    %v178 = vunpack.c.l.s4 1983009808
    %v179 = vunpack.c.0.s8 %v178
    %v180 = vlaneseq
    %v181 = vshrl.u32 %v180, 7
    %v182 = vsub.s32 %v179, %v181
    %v183 = vrot.slane %v165, %v182
    %v184 = vcombine.low %v176, %v183
    %v186 = vadd.f32 %v100, %v184
    %s187 = sadd.s32 0, 0
    %v188 = vlaneseq
    %v189 = vshrl.u32 %v188, 7
    %s190 = smul.u32 %s187, 2
    %v191 = vstv %s190
    %v192 = vadd.s32 %v191, %v189
    %vm193 = vcmp.lt.s32.totalorder %v192, 2
    %vm194 = vcmp.ne.f32.partialorder %v81, -1.0
    %v195 = vsel %vm194, 1, 0
    %v196 = vcvt.s32.f32 %v195
    %v197 = vsel %vm193, 1, 0
    %vm198 = vcmp.eq.s32.totalorder %v197, 1
    %v200 = vcombine.high %v196, %v196
    %v202 = vunpack.c.l.s4 1983009808
    %v203 = vunpack.c.0.s8 %v202
    %v204 = vlaneseq
    %v205 = vshrl.u32 %v204, 7
    %v206 = vsub.s32 %v203, %v205
    %v207 = vrot.slane %v196, %v206
    %v209 = vunpack.c.l.s4 1983009808
    %v210 = vunpack.c.0.s8 %v209
    %v211 = vlaneseq
    %v212 = vshrl.u32 %v211, 7
    %v213 = vsub.s32 %v210, %v212
    %v214 = vrot.slane %v200, %v213
    %v215 = vcombine.high %v207, %v207
    %v219 = vsel %vm198, %v207, 0.0
    %v220 = vsel %vm198, %v215, 0.0
    %v221 = vsel %vm198, %v214, 0.0
    %v222 = vpack.c.bf16 %v219, %v219
    %v223 = vpack.c.bf16 %v220, %v220
    %v224 = vpack.c.bf16 %v221, %v221
    %v225 = vld [vmem:[#allocation9] sm:$0xff]
    %v226 = vld [vmem:[#allocation9 + $0x8] sm:$0xf]
    %v227 = vld [vmem:[#allocation9 + $0xc] sm:$0xff]
    %v228 = vld [vmem:[#allocation9 + $0x14] sm:$0xf]
    %v229 = vld [vmem:[#allocation9 + $0x18] sm:$0xff]
    %v230 = vld [vmem:[#allocation9 + $0x20] sm:$0xf]
    %v231 = vld [vmem:[#allocation9 + $0x24] sm:$0xff]
    %v232 = vld [vmem:[#allocation9 + $0x2c] sm:$0xf]
    %v233 = vld [vmem:[#allocation9 + $0x30] sm:$0xff]
    %v234 = vld [vmem:[#allocation9 + $0x38] sm:$0xf]
    %v235 = vld [vmem:[#allocation9 + $0x3c] sm:$0xff]
    %v236 = vld [vmem:[#allocation9 + $0x44] sm:$0xf]
    %v237 = vld [vmem:[#allocation9 + $0x48] sm:$0xff]
    %v238 = vld [vmem:[#allocation9 + $0x50] sm:$0xf]
    %v239 = vld [vmem:[#allocation9 + $0x54] sm:$0xff]
    %v240 = vld [vmem:[#allocation9 + $0x5c] sm:$0xf]
    %v241 = vld [vmem:[#allocation9 + $0x60] sm:$0xff]
    %v242 = vld [vmem:[#allocation9 + $0x68] sm:$0xf]
    %v243 = vld [vmem:[#allocation9 + $0x6c] sm:$0xff]
    %v244 = vld [vmem:[#allocation9 + $0x74] sm:$0xf]
    %v245 = vld [vmem:[#allocation9 + $0x78] sm:$0xff]
    %v246 = vld [vmem:[#allocation9 + $0x80] sm:$0xf]
    %v247 = vld [vmem:[#allocation9 + $0x84] sm:$0xff]
    %v248 = vld [vmem:[#allocation9 + $0x8c] sm:$0xf]
    %v249 = vld [vmem:[#allocation9 + $0x90] sm:$0xff]
    %v250 = vld [vmem:[#allocation9 + $0x98] sm:$0xf]
    %v251 = vld [vmem:[#allocation9 + $0x9c] sm:$0xff]
    %v252 = vld [vmem:[#allocation9 + $0xa4] sm:$0xf]
    %v253 = vld [vmem:[#allocation9 + $0xa8] sm:$0xff]
    %v254 = vld [vmem:[#allocation9 + $0xb0] sm:$0xf]
    %v255 = vld [vmem:[#allocation9 + $0xb4] sm:$0xff]
    %v256 = vld [vmem:[#allocation9 + $0xbc] sm:$0xf]
    %v257 = vld [vmem:[#allocation9 + $0xc0] sm:$0xff]
    %v258 = vld [vmem:[#allocation9 + $0xc8] sm:$0xf]
    %v259 = vld [vmem:[#allocation9 + $0xcc] sm:$0xff]
    %v260 = vld [vmem:[#allocation9 + $0xd4] sm:$0xf]
    %v261 = vld [vmem:[#allocation9 + $0xd8] sm:$0xff]
    %v262 = vld [vmem:[#allocation9 + $0xe0] sm:$0xf]
    %v263 = vld [vmem:[#allocation9 + $0xe4] sm:$0xff]
    %v264 = vld [vmem:[#allocation9 + $0xec] sm:$0xf]
    %v265 = vld [vmem:[#allocation9 + $0xf0] sm:$0xff]
    %v266 = vld [vmem:[#allocation9 + $0xf8] sm:$0xf]
    %v267 = vld [vmem:[#allocation9 + $0xfc] sm:$0xff]
    %v268 = vld [vmem:[#allocation9 + $0x104] sm:$0xf]
    %v269 = vld [vmem:[#allocation9 + $0x108] sm:$0xff]
    %v270 = vld [vmem:[#allocation9 + $0x110] sm:$0xf]
    %v271 = vld [vmem:[#allocation9 + $0x114] sm:$0xff]
    %v272 = vld [vmem:[#allocation9 + $0x11c] sm:$0xf]
    %v273 = vld [vmem:[#allocation9 + $0x120] sm:$0xff]
    %v274 = vld [vmem:[#allocation9 + $0x128] sm:$0xf]
    %v275 = vld [vmem:[#allocation9 + $0x12c] sm:$0xff]
    %v276 = vld [vmem:[#allocation9 + $0x134] sm:$0xf]
    %v277 = vld [vmem:[#allocation9 + $0x138] sm:$0xff]
    %v278 = vld [vmem:[#allocation9 + $0x140] sm:$0xf]
    %v279 = vld [vmem:[#allocation9 + $0x144] sm:$0xff]
    %v280 = vld [vmem:[#allocation9 + $0x14c] sm:$0xf]
    %v281 = vld [vmem:[#allocation9 + $0x150] sm:$0xff]
    %v282 = vld [vmem:[#allocation9 + $0x158] sm:$0xf]
    %v283 = vld [vmem:[#allocation9 + $0x15c] sm:$0xff]
    %v284 = vld [vmem:[#allocation9 + $0x164] sm:$0xf]
    %v285 = vld [vmem:[#allocation9 + $0x168] sm:$0xff]
    %v286 = vld [vmem:[#allocation9 + $0x170] sm:$0xf]
    %v287 = vld [vmem:[#allocation9 + $0x174] sm:$0xff]
    %v288 = vld [vmem:[#allocation9 + $0x17c] sm:$0xf]
    %v289 = vld [vmem:[#allocation9 + $0x180] sm:$0xff]
    %v290 = vld [vmem:[#allocation9 + $0x188] sm:$0xf]
    %v291 = vld [vmem:[#allocation9 + $0x18c] sm:$0xff]
    %v292 = vld [vmem:[#allocation9 + $0x194] sm:$0xf]
    %v293 = vld [vmem:[#allocation9 + $0x198] sm:$0xff]
    %v294 = vld [vmem:[#allocation9 + $0x1a0] sm:$0xf]
    %v295 = vld [vmem:[#allocation9 + $0x1a4] sm:$0xff]
    %v296 = vld [vmem:[#allocation9 + $0x1ac] sm:$0xf]
    %v297 = vld [vmem:[#allocation9 + $0x1b0] sm:$0xff]
    %v298 = vld [vmem:[#allocation9 + $0x1b8] sm:$0xf]
    %v299 = vld [vmem:[#allocation9 + $0x1bc] sm:$0xff]
    %v300 = vld [vmem:[#allocation9 + $0x1c4] sm:$0xf]
    %v301 = vld [vmem:[#allocation9 + $0x1c8] sm:$0xff]
    %v302 = vld [vmem:[#allocation9 + $0x1d0] sm:$0xf]
    %v303 = vld [vmem:[#allocation9 + $0x1d4] sm:$0xff]
    %v304 = vld [vmem:[#allocation9 + $0x1dc] sm:$0xf]
    %v305 = vld [vmem:[#allocation9 + $0x1e0] sm:$0xff]
    %v306 = vld [vmem:[#allocation9 + $0x1e8] sm:$0xf]
    %v307 = vld [vmem:[#allocation9 + $0x1ec] sm:$0xff]
    %v308 = vld [vmem:[#allocation9 + $0x1f4] sm:$0xf]
    %v309 = vld [vmem:[#allocation9 + $0x1f8] sm:$0xff]
    %v310 = vld [vmem:[#allocation9 + $0x200] sm:$0xf]
    %v311 = vld [vmem:[#allocation9 + $0x204] sm:$0xff]
    %v312 = vld [vmem:[#allocation9 + $0x20c] sm:$0xf]
    %v313 = vld [vmem:[#allocation9 + $0x210] sm:$0xff]
    %v314 = vld [vmem:[#allocation9 + $0x218] sm:$0xf]
    %v315 = vld [vmem:[#allocation9 + $0x21c] sm:$0xff]
    %v316 = vld [vmem:[#allocation9 + $0x224] sm:$0xf]
    %v317 = vld [vmem:[#allocation9 + $0x228] sm:$0xff]
    %v318 = vld [vmem:[#allocation9 + $0x230] sm:$0xf]
    %v319 = vld [vmem:[#allocation9 + $0x234] sm:$0xff]
    %v320 = vld [vmem:[#allocation9 + $0x23c] sm:$0xf]
    %v417 = vunpack.c.l.b16 %v225
    %v418 = vunpack.c.h.b16 %v225
    %v419 = vunpack.c.l.b16 %v226
    %v420 = vunpack.c.l.b16 %v227
    %v421 = vunpack.c.h.b16 %v227
    %v422 = vunpack.c.l.b16 %v228
    %v423 = vunpack.c.l.b16 %v229
    %v424 = vunpack.c.h.b16 %v229
    %v425 = vunpack.c.l.b16 %v230
    %v426 = vunpack.c.l.b16 %v231
    %v427 = vunpack.c.h.b16 %v231
    %v428 = vunpack.c.l.b16 %v232
    %v429 = vunpack.c.l.b16 %v233
    %v430 = vunpack.c.h.b16 %v233
    %v431 = vunpack.c.l.b16 %v234
    %v432 = vunpack.c.l.b16 %v235
    %v433 = vunpack.c.h.b16 %v235
    %v434 = vunpack.c.l.b16 %v236
    %v435 = vunpack.c.l.b16 %v237
    %v436 = vunpack.c.h.b16 %v237
    %v437 = vunpack.c.l.b16 %v238
    %v438 = vunpack.c.l.b16 %v239
    %v439 = vunpack.c.h.b16 %v239
    %v440 = vunpack.c.l.b16 %v240
    %v441 = vunpack.c.l.b16 %v241
    %v442 = vunpack.c.h.b16 %v241
    %v443 = vunpack.c.l.b16 %v242
    %v444 = vunpack.c.l.b16 %v243
    %v445 = vunpack.c.h.b16 %v243
    %v446 = vunpack.c.l.b16 %v244
    %v447 = vunpack.c.l.b16 %v245
    %v448 = vunpack.c.h.b16 %v245
    %v449 = vunpack.c.l.b16 %v246
    %v450 = vunpack.c.l.b16 %v247
    %v451 = vunpack.c.h.b16 %v247
    %v452 = vunpack.c.l.b16 %v248
    %v453 = vunpack.c.l.b16 %v249
    %v454 = vunpack.c.h.b16 %v249
    %v455 = vunpack.c.l.b16 %v250
    %v456 = vunpack.c.l.b16 %v251
    %v457 = vunpack.c.h.b16 %v251
    %v458 = vunpack.c.l.b16 %v252
    %v459 = vunpack.c.l.b16 %v253
    %v460 = vunpack.c.h.b16 %v253
    %v461 = vunpack.c.l.b16 %v254
    %v462 = vunpack.c.l.b16 %v255
    %v463 = vunpack.c.h.b16 %v255
    %v464 = vunpack.c.l.b16 %v256
    %v465 = vunpack.c.l.b16 %v257
    %v466 = vunpack.c.h.b16 %v257
    %v467 = vunpack.c.l.b16 %v258
    %v468 = vunpack.c.l.b16 %v259
    %v469 = vunpack.c.h.b16 %v259
    %v470 = vunpack.c.l.b16 %v260
    %v471 = vunpack.c.l.b16 %v261
    %v472 = vunpack.c.h.b16 %v261
    %v473 = vunpack.c.l.b16 %v262
    %v474 = vunpack.c.l.b16 %v263
    %v475 = vunpack.c.h.b16 %v263
    %v476 = vunpack.c.l.b16 %v264
    %v477 = vunpack.c.l.b16 %v265
    %v478 = vunpack.c.h.b16 %v265
    %v479 = vunpack.c.l.b16 %v266
    %v480 = vunpack.c.l.b16 %v267
    %v481 = vunpack.c.h.b16 %v267
    %v482 = vunpack.c.l.b16 %v268
    %v483 = vunpack.c.l.b16 %v269
    %v484 = vunpack.c.h.b16 %v269
    %v485 = vunpack.c.l.b16 %v270
    %v486 = vunpack.c.l.b16 %v271
    %v487 = vunpack.c.h.b16 %v271
    %v488 = vunpack.c.l.b16 %v272
    %v489 = vunpack.c.l.b16 %v273
    %v490 = vunpack.c.h.b16 %v273
    %v491 = vunpack.c.l.b16 %v274
    %v492 = vunpack.c.l.b16 %v275
    %v493 = vunpack.c.h.b16 %v275
    %v494 = vunpack.c.l.b16 %v276
    %v495 = vunpack.c.l.b16 %v277
    %v496 = vunpack.c.h.b16 %v277
    %v497 = vunpack.c.l.b16 %v278
    %v498 = vunpack.c.l.b16 %v279
    %v499 = vunpack.c.h.b16 %v279
    %v500 = vunpack.c.l.b16 %v280
    %v501 = vunpack.c.l.b16 %v281
    %v502 = vunpack.c.h.b16 %v281
    %v503 = vunpack.c.l.b16 %v282
    %v504 = vunpack.c.l.b16 %v283
    %v505 = vunpack.c.h.b16 %v283
    %v506 = vunpack.c.l.b16 %v284
    %v507 = vunpack.c.l.b16 %v285
    %v508 = vunpack.c.h.b16 %v285
    %v509 = vunpack.c.l.b16 %v286
    %v510 = vunpack.c.l.b16 %v287
    %v511 = vunpack.c.h.b16 %v287
    %v512 = vunpack.c.l.b16 %v288
    %v513 = vunpack.c.l.b16 %v289
    %v514 = vunpack.c.h.b16 %v289
    %v515 = vunpack.c.l.b16 %v290
    %v516 = vunpack.c.l.b16 %v291
    %v517 = vunpack.c.h.b16 %v291
    %v518 = vunpack.c.l.b16 %v292
    %v519 = vunpack.c.l.b16 %v293
    %v520 = vunpack.c.h.b16 %v293
    %v521 = vunpack.c.l.b16 %v294
    %v522 = vunpack.c.l.b16 %v295
    %v523 = vunpack.c.h.b16 %v295
    %v524 = vunpack.c.l.b16 %v296
    %v525 = vunpack.c.l.b16 %v297
    %v526 = vunpack.c.h.b16 %v297
    %v527 = vunpack.c.l.b16 %v298
    %v528 = vunpack.c.l.b16 %v299
    %v529 = vunpack.c.h.b16 %v299
    %v530 = vunpack.c.l.b16 %v300
    %v531 = vunpack.c.l.b16 %v301
    %v532 = vunpack.c.h.b16 %v301
    %v533 = vunpack.c.l.b16 %v302
    %v534 = vunpack.c.l.b16 %v303
    %v535 = vunpack.c.h.b16 %v303
    %v536 = vunpack.c.l.b16 %v304
    %v537 = vunpack.c.l.b16 %v305
    %v538 = vunpack.c.h.b16 %v305
    %v539 = vunpack.c.l.b16 %v306
    %v540 = vunpack.c.l.b16 %v307
    %v541 = vunpack.c.h.b16 %v307
    %v542 = vunpack.c.l.b16 %v308
    %v543 = vunpack.c.l.b16 %v309
    %v544 = vunpack.c.h.b16 %v309
    %v545 = vunpack.c.l.b16 %v310
    %v546 = vunpack.c.l.b16 %v311
    %v547 = vunpack.c.h.b16 %v311
    %v548 = vunpack.c.l.b16 %v312
    %v549 = vunpack.c.l.b16 %v313
    %v550 = vunpack.c.h.b16 %v313
    %v551 = vunpack.c.l.b16 %v314
    %v552 = vunpack.c.l.b16 %v315
    %v553 = vunpack.c.h.b16 %v315
    %v554 = vunpack.c.l.b16 %v316
    %v555 = vunpack.c.l.b16 %v317
    %v556 = vunpack.c.h.b16 %v317
    %v557 = vunpack.c.l.b16 %v318
    %v558 = vunpack.c.l.b16 %v319
    %v559 = vunpack.c.h.b16 %v319
    %v560 = vunpack.c.l.b16 %v320
    %v561 = vpack.c.b16 %v420, %v417
    %v562 = vpack.c.b16 %v421, %v418
    %v563 = vpack.c.b16 %v422, %v419
    %v564 = vpack.c.b16 %v426, %v423
    %v565 = vpack.c.b16 %v427, %v424
    %v566 = vpack.c.b16 %v428, %v425
    %v567 = vpack.c.b16 %v432, %v429
    %v568 = vpack.c.b16 %v433, %v430
    %v569 = vpack.c.b16 %v434, %v431
    %v570 = vpack.c.b16 %v438, %v435
    %v571 = vpack.c.b16 %v439, %v436
    %v572 = vpack.c.b16 %v440, %v437
    %v573 = vpack.c.b16 %v444, %v441
    %v574 = vpack.c.b16 %v445, %v442
    %v575 = vpack.c.b16 %v446, %v443
    %v576 = vpack.c.b16 %v450, %v447
    %v577 = vpack.c.b16 %v451, %v448
    %v578 = vpack.c.b16 %v452, %v449
    %v579 = vpack.c.b16 %v456, %v453
    %v580 = vpack.c.b16 %v457, %v454
    %v581 = vpack.c.b16 %v458, %v455
    %v582 = vpack.c.b16 %v462, %v459
    %v583 = vpack.c.b16 %v463, %v460
    %v584 = vpack.c.b16 %v464, %v461
    %v585 = vpack.c.b16 %v468, %v465
    %v586 = vpack.c.b16 %v469, %v466
    %v587 = vpack.c.b16 %v470, %v467
    %v588 = vpack.c.b16 %v474, %v471
    %v589 = vpack.c.b16 %v475, %v472
    %v590 = vpack.c.b16 %v476, %v473
    %v591 = vpack.c.b16 %v480, %v477
    %v592 = vpack.c.b16 %v481, %v478
    %v593 = vpack.c.b16 %v482, %v479
    %v594 = vpack.c.b16 %v486, %v483
    %v595 = vpack.c.b16 %v487, %v484
    %v596 = vpack.c.b16 %v488, %v485
    %v597 = vpack.c.b16 %v492, %v489
    %v598 = vpack.c.b16 %v493, %v490
    %v599 = vpack.c.b16 %v494, %v491
    %v600 = vpack.c.b16 %v498, %v495
    %v601 = vpack.c.b16 %v499, %v496
    %v602 = vpack.c.b16 %v500, %v497
    %v603 = vpack.c.b16 %v504, %v501
    %v604 = vpack.c.b16 %v505, %v502
    %v605 = vpack.c.b16 %v506, %v503
    %v606 = vpack.c.b16 %v510, %v507
    %v607 = vpack.c.b16 %v511, %v508
    %v608 = vpack.c.b16 %v512, %v509
    %v609 = vpack.c.b16 %v516, %v513
    %v610 = vpack.c.b16 %v517, %v514
    %v611 = vpack.c.b16 %v518, %v515
    %v612 = vpack.c.b16 %v522, %v519
    %v613 = vpack.c.b16 %v523, %v520
    %v614 = vpack.c.b16 %v524, %v521
    %v615 = vpack.c.b16 %v528, %v525
    %v616 = vpack.c.b16 %v529, %v526
    %v617 = vpack.c.b16 %v530, %v527
    %v618 = vpack.c.b16 %v534, %v531
    %v619 = vpack.c.b16 %v535, %v532
    %v620 = vpack.c.b16 %v536, %v533
    %v621 = vpack.c.b16 %v540, %v537
    %v622 = vpack.c.b16 %v541, %v538
    %v623 = vpack.c.b16 %v542, %v539
    %v624 = vpack.c.b16 %v546, %v543
    %v625 = vpack.c.b16 %v547, %v544
    %v626 = vpack.c.b16 %v548, %v545
    %v627 = vpack.c.b16 %v552, %v549
    %v628 = vpack.c.b16 %v553, %v550
    %v629 = vpack.c.b16 %v554, %v551
    %v630 = vpack.c.b16 %v558, %v555
    %v631 = vpack.c.b16 %v559, %v556
    %v632 = vpack.c.b16 %v560, %v557
    %705 = vmatprep.subr.bf16.mxu0 %v583
    %706 = vmatpush1.bf16.msra.mxu0 %v582
    %707 = vmatprep.subr.bf16.mxu0 %v580
    %708 = vmatpush1.bf16.msra.mxu0 %v579
    %709 = vmatprep.subr.bf16.mxu0 %v577
    %710 = vmatpush1.bf16.msra.mxu0 %v576
    %711 = vmatprep.subr.bf16.mxu0 %v574
    %712 = vmatpush1.bf16.msra.mxu0 %v573
    %713 = vmatprep.subr.bf16.mxu0 %v571
    %714 = vmatpush1.bf16.msra.mxu0 %v570
    %715 = vmatprep.subr.bf16.mxu0 %v568
    %716 = vmatpush1.bf16.msra.mxu0 %v567
    %717 = vmatprep.subr.bf16.mxu0 %v565
    %718 = vmatpush1.bf16.msra.mxu0 %v564
    %719 = vmatprep.subr.bf16.mxu0 %v562
    %720 = vmatpush1.bf16.msra.mxu0 %v561
    %721 = vmatprep.subr.bf16.mxu0 %v607
    %722 = vmatpush2.bf16.msra.mxu0 %v606
    %723 = vmatprep.subr.bf16.mxu0 %v604
    %724 = vmatpush2.bf16.msra.mxu0 %v603
    %725 = vmatprep.subr.bf16.mxu0 %v601
    %726 = vmatpush2.bf16.msra.mxu0 %v600
    %727 = vmatprep.subr.bf16.mxu0 %v598
    %728 = vmatpush2.bf16.msra.mxu0 %v597
    %729 = vmatprep.subr.bf16.mxu0 %v595
    %730 = vmatpush2.bf16.msra.mxu0 %v594
    %731 = vmatprep.subr.bf16.mxu0 %v592
    %732 = vmatpush2.bf16.msra.mxu0 %v591
    %733 = vmatprep.subr.bf16.mxu0 %v589
    %734 = vmatpush2.bf16.msra.mxu0 %v588
    %735 = vmatprep.subr.bf16.mxu0 %v586
    %736 = vmatpush2.bf16.msra.mxu0 %v585
    %737 = vmatprep.mubr.bf16.mxu0 %v223
    %738 = vmatmul.mubr.bf16.gmra.mxu0 %v222
    %v739 = vpop.f32.mrf.mxu0
    %v740 = vadd.f32 0.0, %v739
    %v741 = vpop.f32.mrf.mxu0
    %v742 = vadd.f32 0.0, %v741
    %v743 = vpop.f32.mrf.mxu0
    %v744 = vpop.f32.mrf.mxu0
    %745 = vdwg.mxu0
    %746 = vmatprep.subr.bf16.mxu0 %v631
    %747 = vmatpush1.bf16.msra.mxu0 %v630
    %748 = vmatprep.subr.bf16.mxu0 %v628
    %749 = vmatpush1.bf16.msra.mxu0 %v627
    %750 = vmatprep.subr.bf16.mxu0 %v625
    %751 = vmatpush1.bf16.msra.mxu0 %v624
    %752 = vmatprep.subr.bf16.mxu0 %v622
    %753 = vmatpush1.bf16.msra.mxu0 %v621
    %754 = vmatprep.subr.bf16.mxu0 %v619
    %755 = vmatpush1.bf16.msra.mxu0 %v618
    %756 = vmatprep.subr.bf16.mxu0 %v616
    %757 = vmatpush1.bf16.msra.mxu0 %v615
    %758 = vmatprep.subr.bf16.mxu0 %v613
    %759 = vmatpush1.bf16.msra.mxu0 %v612
    %760 = vmatprep.subr.bf16.mxu0 %v610
    %761 = vmatpush1.bf16.msra.mxu0 %v609
    %762 = vmatprep.subr.bf16.mxu0 0
    %763 = vmatpush2.bf16.msra.mxu0 0
    %764 = vmatprep.subr.bf16.mxu0 0
    %765 = vmatpush2.bf16.msra.mxu0 0
    %766 = vmatprep.subr.bf16.mxu0 0
    %767 = vmatpush2.bf16.msra.mxu0 0
    %768 = vmatprep.subr.bf16.mxu0 0
    %769 = vmatpush2.bf16.msra.mxu0 0
    %770 = vmatprep.subr.bf16.mxu0 0
    %771 = vmatpush2.bf16.msra.mxu0 0
    %772 = vmatprep.subr.bf16.mxu0 0
    %773 = vmatpush2.bf16.msra.mxu0 0
    %774 = vmatprep.subr.bf16.mxu0 0
    %775 = vmatpush2.bf16.msra.mxu0 0
    %776 = vmatprep.subr.bf16.mxu0 0
    %777 = vmatpush2.bf16.msra.mxu0 0
    %778 = vmatprep.mubr.bf16.mxu0 0
    %779 = vmatmul.mubr.bf16.gmra.mxu0 %v224
    %v780 = vpop.f32.mrf.mxu0
    %v781 = vadd.f32 %v740, %v780
    %v782 = vpop.f32.mrf.mxu0
    %v783 = vadd.f32 %v742, %v782
    %v784 = vpop.f32.mrf.mxu0
    %v785 = vpop.f32.mrf.mxu0
    %786 = vdwg.mxu0
    %787 = vmatprep.subr.bf16.mxu0 0
    %788 = vmatpush1.bf16.msra.mxu0 %v584
    %789 = vmatprep.subr.bf16.mxu0 0
    %790 = vmatpush1.bf16.msra.mxu0 %v581
    %791 = vmatprep.subr.bf16.mxu0 0
    %792 = vmatpush1.bf16.msra.mxu0 %v578
    %793 = vmatprep.subr.bf16.mxu0 0
    %794 = vmatpush1.bf16.msra.mxu0 %v575
    %795 = vmatprep.subr.bf16.mxu0 0
    %796 = vmatpush1.bf16.msra.mxu0 %v572
    %797 = vmatprep.subr.bf16.mxu0 0
    %798 = vmatpush1.bf16.msra.mxu0 %v569
    %799 = vmatprep.subr.bf16.mxu0 0
    %800 = vmatpush1.bf16.msra.mxu0 %v566
    %801 = vmatprep.subr.bf16.mxu0 0
    %802 = vmatpush1.bf16.msra.mxu0 %v563
    %803 = vmatprep.subr.bf16.mxu0 0
    %804 = vmatpush2.bf16.msra.mxu0 %v608
    %805 = vmatprep.subr.bf16.mxu0 0
    %806 = vmatpush2.bf16.msra.mxu0 %v605
    %807 = vmatprep.subr.bf16.mxu0 0
    %808 = vmatpush2.bf16.msra.mxu0 %v602
    %809 = vmatprep.subr.bf16.mxu0 0
    %810 = vmatpush2.bf16.msra.mxu0 %v599
    %811 = vmatprep.subr.bf16.mxu0 0
    %812 = vmatpush2.bf16.msra.mxu0 %v596
    %813 = vmatprep.subr.bf16.mxu0 0
    %814 = vmatpush2.bf16.msra.mxu0 %v593
    %815 = vmatprep.subr.bf16.mxu0 0
    %816 = vmatpush2.bf16.msra.mxu0 %v590
    %817 = vmatprep.subr.bf16.mxu0 0
    %818 = vmatpush2.bf16.msra.mxu0 %v587
    %819 = vmatprep.mubr.bf16.mxu0 %v223
    %820 = vmatmul.mubr.bf16.gmra.mxu0 %v222
    %v821 = vpop.f32.mrf.mxu0
    %v822 = vadd.f32 0.0, %v821
    %v823 = vpop.f32.mrf.mxu0
    %v824 = vpop.f32.mrf.mxu0
    %v825 = vpop.f32.mrf.mxu0
    %826 = vdwg.mxu0
    %827 = vmatprep.subr.bf16.mxu0 0
    %828 = vmatpush1.bf16.msra.mxu0 %v632
    %829 = vmatprep.subr.bf16.mxu0 0
    %830 = vmatpush1.bf16.msra.mxu0 %v629
    %831 = vmatprep.subr.bf16.mxu0 0
    %832 = vmatpush1.bf16.msra.mxu0 %v626
    %833 = vmatprep.subr.bf16.mxu0 0
    %834 = vmatpush1.bf16.msra.mxu0 %v623
    %835 = vmatprep.subr.bf16.mxu0 0
    %836 = vmatpush1.bf16.msra.mxu0 %v620
    %837 = vmatprep.subr.bf16.mxu0 0
    %838 = vmatpush1.bf16.msra.mxu0 %v617
    %839 = vmatprep.subr.bf16.mxu0 0
    %840 = vmatpush1.bf16.msra.mxu0 %v614
    %841 = vmatprep.subr.bf16.mxu0 0
    %842 = vmatpush1.bf16.msra.mxu0 %v611
    %843 = vmatprep.subr.bf16.mxu0 0
    %844 = vmatpush2.bf16.msra.mxu0 0
    %845 = vmatprep.subr.bf16.mxu0 0
    %846 = vmatpush2.bf16.msra.mxu0 0
    %847 = vmatprep.subr.bf16.mxu0 0
    %848 = vmatpush2.bf16.msra.mxu0 0
    %849 = vmatprep.subr.bf16.mxu0 0
    %850 = vmatpush2.bf16.msra.mxu0 0
    %851 = vmatprep.subr.bf16.mxu0 0
    %852 = vmatpush2.bf16.msra.mxu0 0
    %853 = vmatprep.subr.bf16.mxu0 0
    %854 = vmatpush2.bf16.msra.mxu0 0
    %855 = vmatprep.subr.bf16.mxu0 0
    %856 = vmatpush2.bf16.msra.mxu0 0
    %857 = vmatprep.subr.bf16.mxu0 0
    %858 = vmatpush2.bf16.msra.mxu0 0
    %859 = vmatprep.mubr.bf16.mxu0 0
    %860 = vmatmul.mubr.bf16.gmra.mxu0 %v224
    %v861 = vpop.f32.mrf.mxu0
    %v862 = vadd.f32 %v822, %v861
    %v863 = vpop.f32.mrf.mxu0
    %v864 = vpop.f32.mrf.mxu0
    %v865 = vpop.f32.mrf.mxu0
    %866 = vdwg.mxu0
    %v867 = vld [vmem:[#allocation2] sm:$0x3f]
    %vm868 = vcmp.gt.f32.partialorder %v781, 0.5
    %vm869 = vcmp.gt.f32.partialorder %v783, 0.5
    %vm870 = vcmp.gt.f32.partialorder %v862, 0.5
    %v872 = vcombine.high %v186, %v186
    %v874 = vunpack.c.l.s4 1983009808
    %v875 = vunpack.c.0.s8 %v874
    %v876 = vlaneseq
    %v877 = vshrl.u32 %v876, 7
    %v878 = vsub.s32 %v875, %v877
    %v879 = vrot.slane %v186, %v878
    %v881 = vunpack.c.l.s4 1983009808
    %v882 = vunpack.c.0.s8 %v881
    %v883 = vlaneseq
    %v884 = vshrl.u32 %v883, 7
    %v885 = vsub.s32 %v882, %v884
    %v886 = vrot.slane %v872, %v885
    %v887 = vcombine.high %v879, %v879
    %v891 = vsel %vm868, %v879, 0.0
    %v892 = vsel %vm869, %v887, 0.0
    %v893 = vsel %vm870, %v886, 0.0
    %v897 = vcombine.low %v891, %v892
    %v899 = vunpack.c.l.s4 1983009808
    %v900 = vunpack.c.0.s8 %v899
    %v901 = vlaneseq
    %v902 = vshrl.u32 %v901, 7
    %v903 = vsub.s32 %v900, %v902
    %v904 = vrot.slane %v897, %v903
    %v906 = vunpack.c.l.s4 1983009808
    %v907 = vunpack.c.0.s8 %v906
    %v908 = vlaneseq
    %v909 = vshrl.u32 %v908, 7
    %v910 = vsub.s32 %v907, %v909
    %v911 = vrot.slane %v893, %v910
    %v912 = vcombine.low %v904, %v911
    %v914 = vadd.f32 %v867, %v912
    %915 = vst [vmem:[#allocation2] sm:$0x3f] %v914
    %v916 = vld [vmem:[#allocation3] sm:$0x3f]
    %v920 = vcombine.low %v781, %v783
    %v922 = vunpack.c.l.s4 1983009808
    %v923 = vunpack.c.0.s8 %v922
    %v924 = vlaneseq
    %v925 = vshrl.u32 %v924, 7
    %v926 = vsub.s32 %v923, %v925
    %v927 = vrot.slane %v920, %v926
    %v929 = vunpack.c.l.s4 1983009808
    %v930 = vunpack.c.0.s8 %v929
    %v931 = vlaneseq
    %v932 = vshrl.u32 %v931, 7
    %v933 = vsub.s32 %v930, %v932
    %v934 = vrot.slane %v862, %v933
    %v935 = vcombine.low %v927, %v934
    %v937 = vadd.f32 %v916, %v935
    %938 = vst [vmem:[#allocation3] sm:$0x3f] %v937
    // Predicated region
    $region34: #{tpu_custom_call.1} parent=1 // pred_check
      %p939 = pneg %p74
    $region35: #{tpu_custom_call.1} parent=1 // pred_check_branch
      %941 = sbr.rel (%p939) target = $region37
    $region36: #{tpu_custom_call.1} parent=1 // pred_region
      %v942 = vld [vmem:[#allocation2] sm:$0x3f]
      %v944 = vcombine.high %v942, %v942
      %v946 = vunpack.c.l.s4 1983009808
      %v947 = vunpack.c.0.s8 %v946
      %v948 = vlaneseq
      %v949 = vshrl.u32 %v948, 7
      %v950 = vsub.s32 %v947, %v949
      %v951 = vrot.slane %v942, %v950
      %v953 = vunpack.c.l.s4 1983009808
      %v954 = vunpack.c.0.s8 %v953
      %v955 = vlaneseq
      %v956 = vshrl.u32 %v955, 7
      %v957 = vsub.s32 %v954, %v956
      %v958 = vrot.slane %v944, %v957
      %v959 = vcombine.high %v951, %v951
      %vm963 = vcmask 1041408
      %v964 = vsel %vm963, %v951, 0.0
      %v965 = vsel %vm963, %v959, 0.0
      %v966 = vadd.f32 %v964, %v965
      %v967 = vsel %vm963, %v958, 0.0
      %v968 = vadd.f32 %v966, %v967
      %969 = vadd.xlane.f32.xlu0 %v968
      %v970 = vpop.xlane.xlu0 %969
      %v971 = vrot.slane %v970, 4
      %v972 = vadd.f32 %v970, %v971
      %v973 = vrot.slane %v972, 2
      %v974 = vadd.f32 %v972, %v973
      %v975 = vrot.slane %v974, 1
      %v976 = vadd.f32 %v974, %v975
      %s977 = vtos %v976
      %v978 = vld [vmem:[#allocation3] sm:$0x3f]
      %v980 = vcombine.high %v978, %v978
      %v982 = vunpack.c.l.s4 1983009808
      %v983 = vunpack.c.0.s8 %v982
      %v984 = vlaneseq
      %v985 = vshrl.u32 %v984, 7
      %v986 = vsub.s32 %v983, %v985
      %v987 = vrot.slane %v978, %v986
      %v989 = vunpack.c.l.s4 1983009808
      %v990 = vunpack.c.0.s8 %v989
      %v991 = vlaneseq
      %v992 = vshrl.u32 %v991, 7
      %v993 = vsub.s32 %v990, %v992
      %v994 = vrot.slane %v980, %v993
      %v995 = vcombine.high %v987, %v987
      %v999 = vsel %vm963, %v987, 0.0
      %v1000 = vsel %vm963, %v995, 0.0
      %v1001 = vadd.f32 %v999, %v1000
      %v1002 = vsel %vm963, %v994, 0.0
      %v1003 = vadd.f32 %v1001, %v1002
      %1004 = vadd.xlane.f32.xlu0 %v1003
      %v1005 = vpop.xlane.xlu0 %1004
      %v1006 = vrot.slane %v1005, 4
      %v1007 = vadd.f32 %v1005, %v1006
      %v1008 = vrot.slane %v1007, 2
      %v1009 = vadd.f32 %v1007, %v1008
      %v1010 = vrot.slane %v1009, 1
      %v1011 = vadd.f32 %v1009, %v1010
      %s1012 = vtos %v1011
      %v1013 = vlaneseq
      %v1014 = vand.u32 %v1013, 127
      %vm1015 = vcmp.eq.s32.totalorder %v1014, 0
      %v1016 = vstv %s977
      %v1017 = vstv %s1012
      %v1018 = vsel %vm1015, %v1016, %v1017
      %vm1019 = vcmask 8192
      %1020 = vst.msk [vmem:[#allocation10] sm:$0x1] %vm1019, %v1018
    $region37: #{tpu_custom_call.1} parent=1 // pred_fallthru
      _
    // Predicated region
    $region38: #{tpu_custom_call.1} parent=1 // pred_check
      _
    $region39: #{tpu_custom_call.1} parent=1 // pred_check_branch
      %1022 = sbr.rel (0) target = $region41
    $region40: #{tpu_custom_call.1} parent=1 // pred_region
      %s1024 = ssub.s32 16, 16
      %1025 = vsyncadd [#allocation6], %s1024
      %s1027 = sshll.u32 [#allocation10], 4
      %s1028 = int_to_ptr.vmem [resolvable:$true] %s1027
      %1030 = dma.vmem_to_hbm [thread:$0]  %s1028, 16, %s4, [#allocation6]
    $region41: #{tpu_custom_call.1} parent=1 // pred_fallthru
      _
    // Predicated region
    $region42: #{tpu_custom_call.1} parent=1 // pred_check
      _
    $region43: #{tpu_custom_call.1} parent=1 // pred_check_branch
      %1032 = sbr.rel (0) target = $region45
    $region44: #{tpu_custom_call.1} parent=1 // pred_region
      %1033 = dma.done [#allocation6], 16
    $region45: #{tpu_custom_call.1} parent=1 // pred_fallthru
      _
    %1034 = vsyncpa [#allocation5], 1
    %1035 = vsyncpa [#allocation8], 1
    %1036 = vsyncpa [#allocation6], 1

</llo_original>
